<compile_context>
chip_gen: v6e
topology: v6e:2x2x1
jax: 0.10.0
libtpu: 0.0.40
codegen_flags: <defaults>
</compile_context>

<pallas_src>
import jax
import jax.numpy as jnp
from jax.experimental import pallas as pl
from jax.experimental.pallas import tpu as pltpu

LANE = 128


def _round_up(x, m):
    return ((x + m - 1) // m) * m


def value_mlp_kernel(x_ref, w1_ref, b1_ref, w2_ref, b2_ref, w3_ref, b3_ref,
                     o_ref):
    # x_ref : (TB, S)       f32   -- raw state tile, cast to bf16 in-kernel
    # w1    : (S, H_pad)    bf16
    # b1/b2 : (1, H_pad)    f32
    # w2    : (H_pad, H_pad) bf16
    # w3    : (H_pad, LANE) bf16  -- only column 0 is the real output weight
    # b3    : (1,)          f32   -- SMEM scalar
    # o_ref : (TB, LANE)    f32   -- lane-dense store; column 0 is the value
    x = x_ref[...].astype(jnp.bfloat16)

    h1 = jnp.dot(x, w1_ref[...], preferred_element_type=jnp.float32)
    h1 = jnp.maximum(h1 + b1_ref[...], 0.0)

    h2 = jnp.dot(h1.astype(jnp.bfloat16), w2_ref[...],
                 preferred_element_type=jnp.float32)
    h2 = jnp.maximum(h2 + b2_ref[...], 0.0)

    y = jnp.dot(h2.astype(jnp.bfloat16), w3_ref[...],
                preferred_element_type=jnp.float32)
    o_ref[...] = (y + b3_ref[0]).astype(o_ref.dtype)


def pack_params(params):
    """Pad hidden dims to multiples of 128, cast matmul weights to bf16,
    pad the output layer to a lane-dense (H_pad, 128) block, and pull the
    final bias out as an SMEM scalar. Zero padding is exactly neutral:
    relu(0 + 0) = 0 and padded contraction terms add 0."""
    w1, b1 = params["w1"], params["b1"]
    w2, b2 = params["w2"], params["b2"]
    w3, b3 = params["w3"], params["b3"]
    S, H = w1.shape
    H_pad = _round_up(H, LANE)

    def pad2(a, rows, cols):
        return jnp.pad(a, ((0, rows - a.shape[0]), (0, cols - a.shape[1])))

    packed = {
        "w1": pad2(w1, S, H_pad).astype(jnp.bfloat16),      # (S, H_pad)
        "b1": pad2(b1, 1, H_pad).astype(jnp.float32),
        "w2": pad2(w2, H_pad, H_pad).astype(jnp.bfloat16),
        "b2": pad2(b2, 1, H_pad).astype(jnp.float32),
        "w3": pad2(w3, H_pad, LANE).astype(jnp.bfloat16),    # (H_pad, 128)
        "b3": b3.reshape(1).astype(jnp.float32),             # SMEM scalar
    }
    dims = (S, H, H_pad)
    return packed, dims


def value_network_forward(state, packed, dims, *, block_b=512):
    """state: (B, state_dim) f32. Returns (B, 1) f32."""
    B, S = state.shape
    S_logical, _, H_pad = dims
    assert S == S_logical, (S, S_logical)

    # Batch tiling: one big tile when it fits (minimizes per-grid-step fixed
    # cost on v5e/v6e); otherwise 512-row tiles -> multi-step "parallel" grid
    # that v7x's two TensorCores can split.
    TB_target = max(LANE, _round_up(block_b, LANE))
    if B <= TB_target:
        TB = _round_up(B, 8)      # single tile covering the whole batch
        B_pad = TB
    else:
        TB = TB_target
        B_pad = _round_up(B, TB)
    grid = (B_pad // TB,)

    # Only the batch dim is (possibly) padded; feature dim stays at S so there
    # is no wrapper-side pad/convert pass inflating state HBM traffic.
    x = state if B_pad == B else jnp.pad(state, ((0, B_pad - B), (0, 0)))

    def resident(shape):
        # Constant block index across the batch grid -> stays in VMEM, no re-DMA.
        return pl.BlockSpec(shape, lambda i, _n=len(shape): (0,) * _n)

    out = pl.pallas_call(
        value_mlp_kernel,
        out_shape=jax.ShapeDtypeStruct((B_pad, LANE), jnp.float32),
        grid=grid,
        in_specs=[
            pl.BlockSpec((TB, S), lambda i: (i, 0)),          # state tile (raw f32)
            resident((S, H_pad)),                              # w1
            resident((1, H_pad)),                              # b1
            resident((H_pad, H_pad)),                          # w2
            resident((1, H_pad)),                              # b2
            resident((H_pad, LANE)),                           # w3 (lane-dense out)
            pl.BlockSpec(memory_space=pltpu.MemorySpace.SMEM), # b3 scalar
        ],
        out_specs=pl.BlockSpec((TB, LANE), lambda i: (i, 0)),
        compiler_params=pltpu.CompilerParams(
            dimension_semantics=("parallel",),
        ),
    )(x, packed["w1"], packed["b1"], packed["w2"], packed["b2"],
      packed["w3"], packed["b3"])

    return out[:B, :1]


def init_params(key, state_dim, hidden_dim, init_w=0.003):
    """Mirrors the PyTorch module's init (weights stored as (in, out))."""
    k1, k2, k3, k4, k5, k6 = jax.random.split(key, 6)

    def uniform(k, shape, bound):
        return jax.random.uniform(k, shape, jnp.float32, -bound, bound)

    bnd1 = 1.0 / (state_dim ** 0.5)
    bnd2 = 1.0 / (hidden_dim ** 0.5)
    return {
        "w1": uniform(k1, (state_dim, hidden_dim), bnd1),
        "b1": uniform(k2, (1, hidden_dim), bnd1),
        "w2": uniform(k3, (hidden_dim, hidden_dim), bnd2),
        "b2": uniform(k4, (1, hidden_dim), bnd2),
        # linear3 explicitly re-initialized to U(-init_w, init_w) in the module
        "w3": uniform(k5, (hidden_dim, 1), init_w),
        "b3": uniform(k6, (1, 1), init_w),
    }


def reference_forward(state, p):
    """Pure-JAX reference at matching precision (bf16 matmul inputs, f32 acc)."""
    x = state.astype(jnp.bfloat16)
    h1 = jnp.maximum(
        jnp.dot(x, p["w1"].astype(jnp.bfloat16),
                preferred_element_type=jnp.float32) + p["b1"], 0.0)
    h2 = jnp.maximum(
        jnp.dot(h1.astype(jnp.bfloat16), p["w2"].astype(jnp.bfloat16),
                preferred_element_type=jnp.float32) + p["b2"], 0.0)
    return jnp.dot(h2.astype(jnp.bfloat16), p["w3"].astype(jnp.bfloat16),
                   preferred_element_type=jnp.float32) + p["b3"]


if __name__ == "__main__":
    key = jax.random.PRNGKey(0)
    k_params, k_state = jax.random.split(key)

    state_dim = 27     # stand-in for env.observation_space.shape[0]
    hidden_dim = 64    # small stand-in for hyperparams['hidden_size'] (=256)

    params = init_params(k_params, state_dim, hidden_dim)
    packed, dims = pack_params(params)

    # Case 1: tiny batch -> single grid step covering the whole batch.
    state_small = jax.random.normal(k_state, (8, state_dim), jnp.float32)
    out_small = jax.block_until_ready(
        value_network_forward(state_small, packed, dims))
    ref_small = reference_forward(state_small, params)
    assert out_small.shape == (8, 1), out_small.shape
    err_s = float(jnp.max(jnp.abs(out_small - ref_small)))
    assert jnp.allclose(out_small, ref_small, atol=2e-3, rtol=2e-3), err_s

    # Case 2: batch > tile -> multi-step grid with batch padding (resident weights).
    state_big = jax.random.normal(jax.random.PRNGKey(1), (300, state_dim),
                                  jnp.float32)
    out_big = jax.block_until_ready(
        value_network_forward(state_big, packed, dims, block_b=128))
    ref_big = reference_forward(state_big, params)
    assert out_big.shape == (300, 1), out_big.shape
    err_b = float(jnp.max(jnp.abs(out_big - ref_big)))
    assert jnp.allclose(out_big, ref_big, atol=2e-3, rtol=2e-3), err_b

    print("KERNEL_OK")
</pallas_src>

<mosaic_0001>
module attributes {stable_mosaic.version = 11 : i64} {
  func.func @value_mlp_kernel(%arg0: i32, %arg1: memref<8x27xf32, #tpu.memory_space<vmem>>, %arg2: memref<27x128xbf16, #tpu.memory_space<vmem>>, %arg3: memref<1x128xf32, #tpu.memory_space<vmem>>, %arg4: memref<128x128xbf16, #tpu.memory_space<vmem>>, %arg5: memref<1x128xf32, #tpu.memory_space<vmem>>, %arg6: memref<128x128xbf16, #tpu.memory_space<vmem>>, %arg7: memref<1xf32, #tpu.memory_space<smem>>, %arg8: memref<8x128xf32, #tpu.memory_space<vmem>>) attributes {dimension_semantics = [#tpu.dimension_semantics<parallel>], iteration_bounds = array<i64: 1>, scalar_prefetch = 0 : i64, scratch_operands = 0 : i64, tpu.core_type = #tpu.core_type<tc>, window_params = [{transform_indices = @transform_0, window_bounds = array<i64: 8, 27>}, {pipeline_mode = #tpu.pipeline_mode<synchronous>, transform_indices = @transform_1, window_bounds = array<i64: 27, 128>}, {pipeline_mode = #tpu.pipeline_mode<synchronous>, transform_indices = @transform_2, window_bounds = array<i64: 1, 128>}, {pipeline_mode = #tpu.pipeline_mode<synchronous>, transform_indices = @transform_3, window_bounds = array<i64: 128, 128>}, {pipeline_mode = #tpu.pipeline_mode<synchronous>, transform_indices = @transform_4, window_bounds = array<i64: 1, 128>}, {pipeline_mode = #tpu.pipeline_mode<synchronous>, transform_indices = @transform_5, window_bounds = array<i64: 128, 128>}, {transform_indices = @transform_6, window_bounds = array<i64: 1>}, {transform_indices = @transform_7, window_bounds = array<i64: 8, 128>}]} {
    %c0 = arith.constant 0 : index
    %c0_0 = arith.constant 0 : index
    %0 = vector.load %arg1[%c0, %c0_0] : memref<8x27xf32, #tpu.memory_space<vmem>>, vector<8x27xf32>
    %1 = arith.truncf %0 : vector<8x27xf32> to vector<8x27xbf16>
    %c0_1 = arith.constant 0 : index
    %c0_2 = arith.constant 0 : index
    %2 = vector.load %arg2[%c0_1, %c0_2] : memref<27x128xbf16, #tpu.memory_space<vmem>>, vector<27x128xbf16>
    %cst = arith.constant dense<0.000000e+00> : vector<8x128xf32>
    %3 = tpu.matmul %1, %2, %cst {dimension_numbers = #tpu.dot_dimension_numbers<[1], [0], [0], [1], [0, 0, 1, 1], [], []>} : vector<8x27xbf16>, vector<27x128xbf16>, vector<8x128xf32> -> vector<8x128xf32>
    %c0_3 = arith.constant 0 : index
    %c0_4 = arith.constant 0 : index
    %4 = vector.load %arg3[%c0_3, %c0_4] : memref<1x128xf32, #tpu.memory_space<vmem>>, vector<1x128xf32>
    %5 = vector.broadcast %4 : vector<1x128xf32> to vector<8x128xf32>
    %6 = arith.addf %3, %5 : vector<8x128xf32>
    %cst_5 = arith.constant 0.000000e+00 : f32
    %7 = vector.broadcast %cst_5 : f32 to vector<8x128xf32>
    %8 = arith.maximumf %6, %7 : vector<8x128xf32>
    %9 = arith.truncf %8 : vector<8x128xf32> to vector<8x128xbf16>
    %c0_6 = arith.constant 0 : index
    %c0_7 = arith.constant 0 : index
    %10 = vector.load %arg4[%c0_6, %c0_7] : memref<128x128xbf16, #tpu.memory_space<vmem>>, vector<128x128xbf16>
    %cst_8 = arith.constant dense<0.000000e+00> : vector<8x128xf32>
    %11 = tpu.matmul %9, %10, %cst_8 {dimension_numbers = #tpu.dot_dimension_numbers<[1], [0], [0], [1], [0, 0, 1, 1], [], []>} : vector<8x128xbf16>, vector<128x128xbf16>, vector<8x128xf32> -> vector<8x128xf32>
    %c0_9 = arith.constant 0 : index
    %c0_10 = arith.constant 0 : index
    %12 = vector.load %arg5[%c0_9, %c0_10] : memref<1x128xf32, #tpu.memory_space<vmem>>, vector<1x128xf32>
    %13 = vector.broadcast %12 : vector<1x128xf32> to vector<8x128xf32>
    %14 = arith.addf %11, %13 : vector<8x128xf32>
    %cst_11 = arith.constant 0.000000e+00 : f32
    %15 = vector.broadcast %cst_11 : f32 to vector<8x128xf32>
    %16 = arith.maximumf %14, %15 : vector<8x128xf32>
    %17 = arith.truncf %16 : vector<8x128xf32> to vector<8x128xbf16>
    %c0_12 = arith.constant 0 : index
    %c0_13 = arith.constant 0 : index
    %18 = vector.load %arg6[%c0_12, %c0_13] : memref<128x128xbf16, #tpu.memory_space<vmem>>, vector<128x128xbf16>
    %cst_14 = arith.constant dense<0.000000e+00> : vector<8x128xf32>
    %19 = tpu.matmul %17, %18, %cst_14 {dimension_numbers = #tpu.dot_dimension_numbers<[1], [0], [0], [1], [0, 0, 1, 1], [], []>} : vector<8x128xbf16>, vector<128x128xbf16>, vector<8x128xf32> -> vector<8x128xf32>
    %c0_15 = arith.constant 0 : index
    %20 = memref.load %arg7[%c0_15] : memref<1xf32, #tpu.memory_space<smem>>
    %21 = vector.broadcast %20 : f32 to vector<8x128xf32>
    %22 = arith.addf %19, %21 : vector<8x128xf32>
    %c0_16 = arith.constant 0 : index
    %c0_17 = arith.constant 0 : index
    %23 = vector.load %arg8[%c0_16, %c0_17] : memref<8x128xf32, #tpu.memory_space<vmem>>, vector<8x128xf32>
    tpu.vector_store %arg8[%c0_16, %c0_17], %22 {strides = array<i32>} : memref<8x128xf32, #tpu.memory_space<vmem>>, vector<8x128xf32>,
    return
  }
  func.func @transform_0(%arg0: i32) -> (i32, i32) {
    %c0_i32 = arith.constant 0 : i32
    %c0_i32_0 = arith.constant 0 : i32
    return %arg0, %c0_i32 : i32, i32
  }
  func.func @transform_1(%arg0: i32) -> (i32, i32) {
    %c0_i32 = arith.constant 0 : i32
    %c0_i32_0 = arith.constant 0 : i32
    %c0_i32_1 = arith.constant 0 : i32
    return %c0_i32, %c0_i32_0 : i32, i32
  }
  func.func @transform_2(%arg0: i32) -> (i32, i32) {
    %c0_i32 = arith.constant 0 : i32
    %c0_i32_0 = arith.constant 0 : i32
    %c0_i32_1 = arith.constant 0 : i32
    return %c0_i32, %c0_i32_0 : i32, i32
  }
  func.func @transform_3(%arg0: i32) -> (i32, i32) {
    %c0_i32 = arith.constant 0 : i32
    %c0_i32_0 = arith.constant 0 : i32
    %c0_i32_1 = arith.constant 0 : i32
    return %c0_i32, %c0_i32_0 : i32, i32
  }
  func.func @transform_4(%arg0: i32) -> (i32, i32) {
    %c0_i32 = arith.constant 0 : i32
    %c0_i32_0 = arith.constant 0 : i32
    %c0_i32_1 = arith.constant 0 : i32
    return %c0_i32, %c0_i32_0 : i32, i32
  }
  func.func @transform_5(%arg0: i32) -> (i32, i32) {
    %c0_i32 = arith.constant 0 : i32
    %c0_i32_0 = arith.constant 0 : i32
    %c0_i32_1 = arith.constant 0 : i32
    return %c0_i32, %c0_i32_0 : i32, i32
  }
  func.func @transform_6(%arg0: i32) -> i32 {
    %c0_i32 = arith.constant 0 : i32
    %c0_i32_0 = arith.constant 0 : i32
    return %c0_i32 : i32
  }
  func.func @transform_7(%arg0: i32) -> (i32, i32) {
    %c0_i32 = arith.constant 0 : i32
    %c0_i32_0 = arith.constant 0 : i32
    return %arg0, %c0_i32 : i32, i32
  }
}

</mosaic_0001>

<llo_original>
// kernel: tpu_custom_call.1
$region0: #{tpu_custom_call.1}
  #allocation0 [shape = 'u32[]', space=smem, size = 0x4, offset = 0x4, fixed_abs, tag = 'smem constant byte address 0x4 - core index']
  #allocation1 [shape = 'u32[144,128]{1,0:T(1,128)}', space=vmem, size = 0x12000, scoped, tag = 'internal scratch']
  #allocation2 [shape = 'f32[1]{0:T(128)S(6)}', space=smem, size = 0x200, scoped, tag = 'scoped memory for tpu_custom_call.1']
  %s0 = inlined_call_operand.hbm [shape: f32[8,27], index: 0, kind: input, shape index: {}]
  %s1 = inlined_call_operand.hbm [shape: bf16[27,128], index: 1, kind: input, shape index: {}]
  %s2 = inlined_call_operand.vmem [shape: f32[1,128], index: 2, kind: input, shape index: {}]
  %s3 = inlined_call_operand.hbm [shape: bf16[128,128], index: 3, kind: input, shape index: {}]
  %s4 = inlined_call_operand.vmem [shape: f32[1,128], index: 4, kind: input, shape index: {}]
  %s5 = inlined_call_operand.hbm [shape: bf16[128,128], index: 5, kind: input, shape index: {}]
  %s6 = inlined_call_operand.<no memory space> [shape: f32[1], index: 6, kind: input, shape index: {}]
  %s7 = inlined_call_operand.hbm [shape: f32[8,128], index: 7, kind: output, shape index: {}]
  %s8 = sld [smem:[#allocation0]]
  $region54: #{tpu_custom_call.1} parent=0
    _
  %s10 = ssub.s32 1, %s8
  %s11 = scalar_select 0, %s10, %s8
  %12 = sst [smem:[#allocation2]] %s6
  $region1: #{tpu_custom_call.1} parent=0
    #allocation3 [shape = 'u8[4096]{0}', space=vmem, size = 0x1000, scoped, tag = 'input window, operand 0, single buffered']
    #allocation4 [shape = 's32[1]{0}', space=sflag, size = 0x4, scoped, tag = 'scoped memory for tpu_custom_call.1']
    #allocation5 [shape = 's32[1]{0}', space=sflag, size = 0x4, scoped, tag = 'scoped memory for tpu_custom_call.1']
    #allocation6 [shape = 'u8[8192]{0}', space=vmem, size = 0x2000, scoped, tag = 'input window, operand 1, single buffered']
    #allocation7 [shape = 's32[1]{0}', space=sflag, size = 0x4, scoped, tag = 'scoped memory for tpu_custom_call.1']
    #allocation8 [shape = 'u8[32768]{0}', space=vmem, size = 0x8000, scoped, tag = 'input window, operand 3, single buffered']
    #allocation9 [shape = 'u8[32768]{0}', space=vmem, size = 0x8000, scoped, tag = 'input window, operand 5, single buffered']
    #allocation10 [shape = 's32[1]{0}', space=sflag, size = 0x4, scoped, tag = 'scoped memory for tpu_custom_call.1']
    #allocation11 [shape = 'u8[4096]{0}', space=vmem, size = 0x1000, scoped, tag = 'output window, operand 0, single buffered']
    %13 = vsyncpa [#allocation4], 0
    %14 = vsyncpa [#allocation7], 0
    %15 = vsyncpa [#allocation10], 0
    %16 = vsyncpa [#allocation5], 0
    // Predicated region
    $region2: #{tpu_custom_call.1} parent=1 // pred_check
      _
    $region3: #{tpu_custom_call.1} parent=1 // pred_check_branch
      %18 = sbr.rel (0) target = $region5
    $region4: #{tpu_custom_call.1} parent=1 // pred_region
      %s20 = ssub.s32 128, 128
      %21 = vsyncadd [#allocation4], %s20
      %s23 = sshll.u32 [#allocation3], 4
      %s24 = int_to_ptr.vmem [resolvable:$true] %s23
      %26 = dma.hbm_to_vmem [thread:$0]  %s0, 128, %s24, [#allocation4]
    $region5: #{tpu_custom_call.1} parent=1 // pred_fallthru
      _
    // Predicated region
    $region6: #{tpu_custom_call.1} parent=1 // pred_check
      _
    $region7: #{tpu_custom_call.1} parent=1 // pred_check_branch
      %28 = sbr.rel (0) target = $region9
    $region8: #{tpu_custom_call.1} parent=1 // pred_region
      %s30 = ssub.s32 256, 256
      %31 = vsyncadd [#allocation7], %s30
      %s32 = sshll.u32 [#allocation6], 4
      %s33 = int_to_ptr.vmem [resolvable:$true] %s32
      %38 = dma.hbm_to_vmem [thread:$0]  %s1, 256, %s33, [#allocation7], 64, 64, 4
    $region9: #{tpu_custom_call.1} parent=1 // pred_fallthru
      _
    // Predicated region
    $region10: #{tpu_custom_call.1} parent=1 // pred_check
      _
    $region11: #{tpu_custom_call.1} parent=1 // pred_check_branch
      %40 = sbr.rel (0) target = $region13
    $region12: #{tpu_custom_call.1} parent=1 // pred_region
      _
    $region13: #{tpu_custom_call.1} parent=1 // pred_fallthru
      _
    // Predicated region
    $region14: #{tpu_custom_call.1} parent=1 // pred_check
      _
    $region15: #{tpu_custom_call.1} parent=1 // pred_check_branch
      %42 = sbr.rel (0) target = $region17
    $region16: #{tpu_custom_call.1} parent=1 // pred_region
      %s44 = ssub.s32 1024, 1024
      %45 = vsyncadd [#allocation7], %s44
      %s46 = sshll.u32 [#allocation8], 4
      %s47 = int_to_ptr.vmem [resolvable:$true] %s46
      %52 = dma.hbm_to_vmem [thread:$0]  %s3, 1024, %s47, [#allocation7], 64, 64, 4
    $region17: #{tpu_custom_call.1} parent=1 // pred_fallthru
      _
    // Predicated region
    $region18: #{tpu_custom_call.1} parent=1 // pred_check
      _
    $region19: #{tpu_custom_call.1} parent=1 // pred_check_branch
      %54 = sbr.rel (0) target = $region21
    $region20: #{tpu_custom_call.1} parent=1 // pred_region
      _
    $region21: #{tpu_custom_call.1} parent=1 // pred_fallthru
      _
    // Predicated region
    $region22: #{tpu_custom_call.1} parent=1 // pred_check
      _
    $region23: #{tpu_custom_call.1} parent=1 // pred_check_branch
      %56 = sbr.rel (0) target = $region25
    $region24: #{tpu_custom_call.1} parent=1 // pred_region
      %s58 = ssub.s32 1024, 1024
      %59 = vsyncadd [#allocation10], %s58
      %s60 = sshll.u32 [#allocation9], 4
      %s61 = int_to_ptr.vmem [resolvable:$true] %s60
      %66 = dma.hbm_to_vmem [thread:$0]  %s5, 1024, %s61, [#allocation10], 64, 64, 4
    $region25: #{tpu_custom_call.1} parent=1 // pred_fallthru
      _
    // Predicated region
    $region26: #{tpu_custom_call.1} parent=1 // pred_check
      _
    $region27: #{tpu_custom_call.1} parent=1 // pred_check_branch
      %68 = sbr.rel (0) target = $region29
    $region28: #{tpu_custom_call.1} parent=1 // pred_region
      _
    $region29: #{tpu_custom_call.1} parent=1 // pred_fallthru
      _
    // Predicated region
    $region30: #{tpu_custom_call.1} parent=1 // pred_check
      _
    $region31: #{tpu_custom_call.1} parent=1 // pred_check_branch
      %70 = sbr.rel (0) target = $region33
    $region32: #{tpu_custom_call.1} parent=1 // pred_region
      %71 = dma.done [#allocation4], 128
    $region33: #{tpu_custom_call.1} parent=1 // pred_fallthru
      _
    // Predicated region
    $region34: #{tpu_custom_call.1} parent=1 // pred_check
      _
    $region35: #{tpu_custom_call.1} parent=1 // pred_check_branch
      %73 = sbr.rel (0) target = $region37
    $region36: #{tpu_custom_call.1} parent=1 // pred_region
      %74 = dma.done [#allocation7], 256
    $region37: #{tpu_custom_call.1} parent=1 // pred_fallthru
      _
    // Predicated region
    $region38: #{tpu_custom_call.1} parent=1 // pred_check
      _
    $region39: #{tpu_custom_call.1} parent=1 // pred_check_branch
      %76 = sbr.rel (0) target = $region41
    $region40: #{tpu_custom_call.1} parent=1 // pred_region
      %77 = dma.done [#allocation7], 1024
    $region41: #{tpu_custom_call.1} parent=1 // pred_fallthru
      _
    // Predicated region
    $region42: #{tpu_custom_call.1} parent=1 // pred_check
      _
    $region43: #{tpu_custom_call.1} parent=1 // pred_check_branch
      %79 = sbr.rel (0) target = $region45
    $region44: #{tpu_custom_call.1} parent=1 // pred_region
      %80 = dma.done [#allocation10], 1024
    $region45: #{tpu_custom_call.1} parent=1 // pred_fallthru
      _
    %v82 = vld [vmem:[#allocation3] sm:$0xff]
    %v83 = vpack.c.bf16 %v82, %v82
    %v84 = vld [vmem:[#allocation6] sm:$0xf]
    %v85 = vld [vmem:[#allocation6 + $0x4] sm:$0xf]
    %v86 = vld [vmem:[#allocation6 + $0x8] sm:$0xf]
    %v87 = vld [vmem:[#allocation6 + $0xc] sm:$0x3]
    %v88 = vld [vmem:[%s2] sm:$0x1]
    %v90 = vlaneseq
    %v91 = vshrl.u32 %v90, 7
    %v92 = vsub.s32 0, %v91
    %v93 = vrot.slane %v88, %v92
    %v99 = vunpack.c.l.b16 %v84
    %v100 = vunpack.c.l.b16 %v85
    %v101 = vunpack.c.l.b16 %v86
    %v102 = vunpack.c.l.b16 %v87
    %v103 = vpack.c.b16 %v100, %v99
    %v104 = vpack.c.b16 %v102, %v101
    %vm106 = vcmask 220160
    %v108 = vsel %vm106, %v83, 0
    %vm110 = vcmask 1044480
    %vm111 = vcmask 1045504
    %v112 = vsel %vm110, 4294967295, 65535
    %v113 = vsel %vm111, %v112, 0
    %v115 = vand.u32 %v104, %v113
    %117 = vmatprep.subr.bf16.mxu0 0
    %118 = vmatpush1.bf16.msra.mxu0 0
    %119 = vmatprep.subr.bf16.mxu0 0
    %120 = vmatpush1.bf16.msra.mxu0 0
    %121 = vmatprep.subr.bf16.mxu0 0
    %122 = vmatpush1.bf16.msra.mxu0 0
    %123 = vmatprep.subr.bf16.mxu0 0
    %124 = vmatpush1.bf16.msra.mxu0 0
    %125 = vmatprep.subr.bf16.mxu0 0
    %126 = vmatpush1.bf16.msra.mxu0 0
    %127 = vmatprep.subr.bf16.mxu0 0
    %128 = vmatpush1.bf16.msra.mxu0 0
    %129 = vmatprep.subr.bf16.mxu0 0
    %130 = vmatpush1.bf16.msra.mxu0 %v115
    %131 = vmatprep.subr.bf16.mxu0 0
    %132 = vmatpush1.bf16.msra.mxu0 %v103
    %133 = vmatprep.subr.bf16.mxu0 0
    %134 = vmatpush2.bf16.msra.mxu0 0
    %135 = vmatprep.subr.bf16.mxu0 0
    %136 = vmatpush2.bf16.msra.mxu0 0
    %137 = vmatprep.subr.bf16.mxu0 0
    %138 = vmatpush2.bf16.msra.mxu0 0
    %139 = vmatprep.subr.bf16.mxu0 0
    %140 = vmatpush2.bf16.msra.mxu0 0
    %141 = vmatprep.subr.bf16.mxu0 0
    %142 = vmatpush2.bf16.msra.mxu0 0
    %143 = vmatprep.subr.bf16.mxu0 0
    %144 = vmatpush2.bf16.msra.mxu0 0
    %145 = vmatprep.subr.bf16.mxu0 0
    %146 = vmatpush2.bf16.msra.mxu0 0
    %147 = vmatprep.subr.bf16.mxu0 0
    %148 = vmatpush2.bf16.msra.mxu0 0
    %149 = vmatprep.mubr.bf16.mxu0 0
    %150 = vmatmul.mubr.bf16.gmra.mxu0 %v108
    %v151 = vpop.f32.mrf.mxu0
    %v152 = vadd.f32 %v93, %v151
    %v153 = vpop.f32.mrf.mxu0
    %v154 = vpop.f32.mrf.mxu0
    %v155 = vpop.f32.mrf.mxu0
    %156 = vdwg.mxu0
    %v157 = vmax.f32 %v152, 0.0
    %v158 = vpack.c.bf16 %v157, %v157
    %v159 = vld [vmem:[#allocation8] sm:$0xf]
    %v160 = vld [vmem:[#allocation8 + $0x4] sm:$0xf]
    %v161 = vld [vmem:[#allocation8 + $0x8] sm:$0xf]
    %v162 = vld [vmem:[#allocation8 + $0xc] sm:$0xf]
    %v163 = vld [vmem:[#allocation8 + $0x10] sm:$0xf]
    %v164 = vld [vmem:[#allocation8 + $0x14] sm:$0xf]
    %v165 = vld [vmem:[#allocation8 + $0x18] sm:$0xf]
    %v166 = vld [vmem:[#allocation8 + $0x1c] sm:$0xf]
    %v167 = vld [vmem:[#allocation8 + $0x20] sm:$0xf]
    %v168 = vld [vmem:[#allocation8 + $0x24] sm:$0xf]
    %v169 = vld [vmem:[#allocation8 + $0x28] sm:$0xf]
    %v170 = vld [vmem:[#allocation8 + $0x2c] sm:$0xf]
    %v171 = vld [vmem:[#allocation8 + $0x30] sm:$0xf]
    %v172 = vld [vmem:[#allocation8 + $0x34] sm:$0xf]
    %v173 = vld [vmem:[#allocation8 + $0x38] sm:$0xf]
    %v174 = vld [vmem:[#allocation8 + $0x3c] sm:$0xf]
    %v175 = vld [vmem:[%s4] sm:$0x1]
    %v177 = vlaneseq
    %v178 = vshrl.u32 %v177, 7
    %v179 = vsub.s32 0, %v178
    %v180 = vrot.slane %v175, %v179
    %v198 = vunpack.c.l.b16 %v159
    %v199 = vunpack.c.l.b16 %v160
    %v200 = vunpack.c.l.b16 %v161
    %v201 = vunpack.c.l.b16 %v162
    %v202 = vunpack.c.l.b16 %v163
    %v203 = vunpack.c.l.b16 %v164
    %v204 = vunpack.c.l.b16 %v165
    %v205 = vunpack.c.l.b16 %v166
    %v206 = vunpack.c.l.b16 %v167
    %v207 = vunpack.c.l.b16 %v168
    %v208 = vunpack.c.l.b16 %v169
    %v209 = vunpack.c.l.b16 %v170
    %v210 = vunpack.c.l.b16 %v171
    %v211 = vunpack.c.l.b16 %v172
    %v212 = vunpack.c.l.b16 %v173
    %v213 = vunpack.c.l.b16 %v174
    %v214 = vpack.c.b16 %v199, %v198
    %v215 = vpack.c.b16 %v201, %v200
    %v216 = vpack.c.b16 %v203, %v202
    %v217 = vpack.c.b16 %v205, %v204
    %v218 = vpack.c.b16 %v207, %v206
    %v219 = vpack.c.b16 %v209, %v208
    %v220 = vpack.c.b16 %v211, %v210
    %v221 = vpack.c.b16 %v213, %v212
    %230 = vmatprep.subr.bf16.mxu0 0
    %231 = vmatpush1.bf16.msra.mxu0 %v221
    %232 = vmatprep.subr.bf16.mxu0 0
    %233 = vmatpush1.bf16.msra.mxu0 %v220
    %234 = vmatprep.subr.bf16.mxu0 0
    %235 = vmatpush1.bf16.msra.mxu0 %v219
    %236 = vmatprep.subr.bf16.mxu0 0
    %237 = vmatpush1.bf16.msra.mxu0 %v218
    %238 = vmatprep.subr.bf16.mxu0 0
    %239 = vmatpush1.bf16.msra.mxu0 %v217
    %240 = vmatprep.subr.bf16.mxu0 0
    %241 = vmatpush1.bf16.msra.mxu0 %v216
    %242 = vmatprep.subr.bf16.mxu0 0
    %243 = vmatpush1.bf16.msra.mxu0 %v215
    %244 = vmatprep.subr.bf16.mxu0 0
    %245 = vmatpush1.bf16.msra.mxu0 %v214
    %246 = vmatprep.subr.bf16.mxu0 0
    %247 = vmatpush2.bf16.msra.mxu0 0
    %248 = vmatprep.subr.bf16.mxu0 0
    %249 = vmatpush2.bf16.msra.mxu0 0
    %250 = vmatprep.subr.bf16.mxu0 0
    %251 = vmatpush2.bf16.msra.mxu0 0
    %252 = vmatprep.subr.bf16.mxu0 0
    %253 = vmatpush2.bf16.msra.mxu0 0
    %254 = vmatprep.subr.bf16.mxu0 0
    %255 = vmatpush2.bf16.msra.mxu0 0
    %256 = vmatprep.subr.bf16.mxu0 0
    %257 = vmatpush2.bf16.msra.mxu0 0
    %258 = vmatprep.subr.bf16.mxu0 0
    %259 = vmatpush2.bf16.msra.mxu0 0
    %260 = vmatprep.subr.bf16.mxu0 0
    %261 = vmatpush2.bf16.msra.mxu0 0
    %262 = vmatprep.mubr.bf16.mxu0 0
    %263 = vmatmul.mubr.bf16.gmra.mxu0 %v158
    %v264 = vpop.f32.mrf.mxu0
    %v265 = vadd.f32 %v180, %v264
    %v266 = vpop.f32.mrf.mxu0
    %v267 = vpop.f32.mrf.mxu0
    %v268 = vpop.f32.mrf.mxu0
    %269 = vdwg.mxu0
    %v270 = vmax.f32 %v265, 0.0
    %v271 = vpack.c.bf16 %v270, %v270
    %v272 = vld [vmem:[#allocation9] sm:$0xf]
    %v273 = vld [vmem:[#allocation9 + $0x4] sm:$0xf]
    %v274 = vld [vmem:[#allocation9 + $0x8] sm:$0xf]
    %v275 = vld [vmem:[#allocation9 + $0xc] sm:$0xf]
    %v276 = vld [vmem:[#allocation9 + $0x10] sm:$0xf]
    %v277 = vld [vmem:[#allocation9 + $0x14] sm:$0xf]
    %v278 = vld [vmem:[#allocation9 + $0x18] sm:$0xf]
    %v279 = vld [vmem:[#allocation9 + $0x1c] sm:$0xf]
    %v280 = vld [vmem:[#allocation9 + $0x20] sm:$0xf]
    %v281 = vld [vmem:[#allocation9 + $0x24] sm:$0xf]
    %v282 = vld [vmem:[#allocation9 + $0x28] sm:$0xf]
    %v283 = vld [vmem:[#allocation9 + $0x2c] sm:$0xf]
    %v284 = vld [vmem:[#allocation9 + $0x30] sm:$0xf]
    %v285 = vld [vmem:[#allocation9 + $0x34] sm:$0xf]
    %v286 = vld [vmem:[#allocation9 + $0x38] sm:$0xf]
    %v287 = vld [vmem:[#allocation9 + $0x3c] sm:$0xf]
    %s288 = sld [smem:[#allocation2]]
    %v289 = vstv %s288
    %v306 = vunpack.c.l.b16 %v272
    %v307 = vunpack.c.l.b16 %v273
    %v308 = vunpack.c.l.b16 %v274
    %v309 = vunpack.c.l.b16 %v275
    %v310 = vunpack.c.l.b16 %v276
    %v311 = vunpack.c.l.b16 %v277
    %v312 = vunpack.c.l.b16 %v278
    %v313 = vunpack.c.l.b16 %v279
    %v314 = vunpack.c.l.b16 %v280
    %v315 = vunpack.c.l.b16 %v281
    %v316 = vunpack.c.l.b16 %v282
    %v317 = vunpack.c.l.b16 %v283
    %v318 = vunpack.c.l.b16 %v284
    %v319 = vunpack.c.l.b16 %v285
    %v320 = vunpack.c.l.b16 %v286
    %v321 = vunpack.c.l.b16 %v287
    %v322 = vpack.c.b16 %v307, %v306
    %v323 = vpack.c.b16 %v309, %v308
    %v324 = vpack.c.b16 %v311, %v310
    %v325 = vpack.c.b16 %v313, %v312
    %v326 = vpack.c.b16 %v315, %v314
    %v327 = vpack.c.b16 %v317, %v316
    %v328 = vpack.c.b16 %v319, %v318
    %v329 = vpack.c.b16 %v321, %v320
    %338 = vmatprep.subr.bf16.mxu0 0
    %339 = vmatpush1.bf16.msra.mxu0 %v329
    %340 = vmatprep.subr.bf16.mxu0 0
    %341 = vmatpush1.bf16.msra.mxu0 %v328
    %342 = vmatprep.subr.bf16.mxu0 0
    %343 = vmatpush1.bf16.msra.mxu0 %v327
    %344 = vmatprep.subr.bf16.mxu0 0
    %345 = vmatpush1.bf16.msra.mxu0 %v326
    %346 = vmatprep.subr.bf16.mxu0 0
    %347 = vmatpush1.bf16.msra.mxu0 %v325
    %348 = vmatprep.subr.bf16.mxu0 0
    %349 = vmatpush1.bf16.msra.mxu0 %v324
    %350 = vmatprep.subr.bf16.mxu0 0
    %351 = vmatpush1.bf16.msra.mxu0 %v323
    %352 = vmatprep.subr.bf16.mxu0 0
    %353 = vmatpush1.bf16.msra.mxu0 %v322
    %354 = vmatprep.subr.bf16.mxu0 0
    %355 = vmatpush2.bf16.msra.mxu0 0
    %356 = vmatprep.subr.bf16.mxu0 0
    %357 = vmatpush2.bf16.msra.mxu0 0
    %358 = vmatprep.subr.bf16.mxu0 0
    %359 = vmatpush2.bf16.msra.mxu0 0
    %360 = vmatprep.subr.bf16.mxu0 0
    %361 = vmatpush2.bf16.msra.mxu0 0
    %362 = vmatprep.subr.bf16.mxu0 0
    %363 = vmatpush2.bf16.msra.mxu0 0
    %364 = vmatprep.subr.bf16.mxu0 0
    %365 = vmatpush2.bf16.msra.mxu0 0
    %366 = vmatprep.subr.bf16.mxu0 0
    %367 = vmatpush2.bf16.msra.mxu0 0
    %368 = vmatprep.subr.bf16.mxu0 0
    %369 = vmatpush2.bf16.msra.mxu0 0
    %370 = vmatprep.mubr.bf16.mxu0 0
    %371 = vmatmul.mubr.bf16.gmra.mxu0 %v271
    %v372 = vpop.f32.mrf.mxu0
    %v373 = vadd.f32 %v289, %v372
    %v374 = vpop.f32.mrf.mxu0
    %v375 = vpop.f32.mrf.mxu0
    %v376 = vpop.f32.mrf.mxu0
    %377 = vdwg.mxu0
    %378 = vst [vmem:[#allocation11] sm:$0xff] %v373
    // Predicated region
    $region46: #{tpu_custom_call.1} parent=1 // pred_check
      _
    $region47: #{tpu_custom_call.1} parent=1 // pred_check_branch
      %380 = sbr.rel (0) target = $region49
    $region48: #{tpu_custom_call.1} parent=1 // pred_region
      %s382 = ssub.s32 128, 128
      %383 = vsyncadd [#allocation5], %s382
      %s385 = sshll.u32 [#allocation11], 4
      %s386 = int_to_ptr.vmem [resolvable:$true] %s385
      %388 = dma.vmem_to_hbm [thread:$0]  %s386, 128, %s7, [#allocation5]
    $region49: #{tpu_custom_call.1} parent=1 // pred_fallthru
      _
    // Predicated region
    $region50: #{tpu_custom_call.1} parent=1 // pred_check
      _
    $region51: #{tpu_custom_call.1} parent=1 // pred_check_branch
      %390 = sbr.rel (0) target = $region53
    $region52: #{tpu_custom_call.1} parent=1 // pred_region
      %391 = dma.done [#allocation5], 128
    $region53: #{tpu_custom_call.1} parent=1 // pred_fallthru
      _
    %392 = vsyncpa [#allocation4], 1
    %393 = vsyncpa [#allocation7], 1
    %394 = vsyncpa [#allocation10], 1
    %395 = vsyncpa [#allocation5], 1

</llo_original>
